<compile_context>
chip_gen: v5e
topology: v5e:2x2
jax: 0.10.0
libtpu: 0.0.40
codegen_flags: <defaults>
</compile_context>

<pallas_src>
import functools

import jax
import jax.numpy as jnp
from jax.experimental import pallas as pl
from jax.experimental.pallas import tpu as pltpu

HIDDEN = 400            # logical hidden size (nn.Linear(input_size, 400))
HIDDEN_PAD = 512        # padded to a multiple of 128 lanes
HEAD_PAD = 128          # fused head output padded to one full lane group
BATCH_TILE = 512        # rows per grid step (512: fits v5e scoped VMEM easily)
VMEM_LIMIT = 32 * 1024 * 1024   # explicit scoped-VMEM limit (safe on all gens)


def _mlp_kernel(x_ref, w1_ref, b1_ref, w2_ref, b2_ref, wh_ref, bh_ref, out_ref):
    """Fused fc1+relu -> fc2+relu -> fused(mean|log_var) head for one row tile."""
    cdt = w1_ref.dtype  # MXU operand dtype (float32 exact path or bfloat16 fast path)

    # fc1 + relu  (dropout is identity in eval mode); accumulate in f32.
    h1 = jnp.dot(x_ref[...], w1_ref[...], preferred_element_type=jnp.float32)
    h1 = jnp.maximum(h1 + b1_ref[...], 0.0)

    # fc2 + relu  (dropout is identity in eval mode).
    h2 = jnp.dot(h1.astype(cdt), w2_ref[...], preferred_element_type=jnp.float32)
    h2 = jnp.maximum(h2 + b2_ref[...], 0.0)

    # Fused heads: lane 0 -> mean, lane 1 -> log_var, lanes 2.. -> zero padding.
    out_ref[...] = (jnp.dot(h2.astype(cdt), wh_ref[...],
                            preferred_element_type=jnp.float32) + bh_ref[...])
    # TODO(synk): training-mode dropout (stochastic masking via pltpu.prng_*) not
    # implemented; kernel reproduces eval-mode (inference) semantics.


def prepare_params(params, matmul_dtype=jnp.float32):
    """Pad / fuse the logical Linear params into the kernel's MXU-friendly layout.

    Logical params (weights pre-transposed to (in, out)):
      w1 (F, 400), b1 (1, 400), w2 (400, 400), b2 (1, 400),
      wm (400, 1), bm (1, 1), wv (400, 1), bv (1, 1)
    Kernel params (weights cast to `matmul_dtype`; biases kept f32):
      w1p (F, 512), b1p (1, 512), w2p (512, 512), b2p (1, 512),
      whp (512, 128), bhp (1, 128)
    """
    w1, b1, w2, b2, wm, bm, wv, bv = params
    f = w1.shape[0]

    w1p = jnp.zeros((f, HIDDEN_PAD), jnp.float32).at[:, :HIDDEN].set(w1)
    b1p = jnp.zeros((1, HIDDEN_PAD), jnp.float32).at[:, :HIDDEN].set(b1)

    w2p = jnp.zeros((HIDDEN_PAD, HIDDEN_PAD), jnp.float32).at[:HIDDEN, :HIDDEN].set(w2)
    b2p = jnp.zeros((1, HIDDEN_PAD), jnp.float32).at[:, :HIDDEN].set(b2)

    # Fused head: mean in lane 0, log_var in lane 1, zeros elsewhere.
    whp = (jnp.zeros((HIDDEN_PAD, HEAD_PAD), jnp.float32)
           .at[:HIDDEN, 0:1].set(wm)
           .at[:HIDDEN, 1:2].set(wv))
    bhp = (jnp.zeros((1, HEAD_PAD), jnp.float32)
           .at[:, 0:1].set(bm)
           .at[:, 1:2].set(bv))

    return (w1p.astype(matmul_dtype), b1p,
            w2p.astype(matmul_dtype), b2p,
            whp.astype(matmul_dtype), bhp)


def _resident_spec(shape):
    """Weight/bias block: same block index every grid step.  Request
    single-buffering when the installed Pallas supports pipeline_mode
    (saves ~1.3 MiB of VMEM); otherwise fall back to the default."""
    idx = lambda i: (0, 0)
    try:
        return pl.BlockSpec(shape, idx, pipeline_mode=pl.Buffered(1))
    except (AttributeError, TypeError):
        return pl.BlockSpec(shape, idx)


@jax.jit
def ffc_regression_parkinsons(x, kernel_params):
    """x: (B, input_size). Returns (mean, log_var), each (B, 1) float32."""
    B, F = x.shape
    w1p, b1p, w2p, b2p, whp, bhp = kernel_params
    x = x.astype(w1p.dtype)   # match MXU operand dtype (halves x DMA in bf16 mode)

    if B <= BATCH_TILE:
        # Tiny-batch path: one grid-less block, everything VMEM resident
        # (< 4 MiB total footprint, no per-step pipeline overhead).
        vmem = pl.BlockSpec(memory_space=pltpu.MemorySpace.VMEM)
        out_pad = pl.pallas_call(
            _mlp_kernel,
            out_shape=jax.ShapeDtypeStruct((B, HEAD_PAD), jnp.float32),
            in_specs=[vmem] * 7,
            out_specs=vmem,
        )(x, w1p, b1p, w2p, b2p, whp, bhp)
    else:
        # Batch-parallel grid: weights resident, rows sharded across
        # TensorCores (dimension_semantics=("parallel",)).  Pad B to an even
        # number of BATCH_TILE tiles so both v7x TCs stay busy on the tail.
        n_steps = -(-B // BATCH_TILE)
        if n_steps % 2 == 1:
            n_steps += 1
        b_pad = n_steps * BATCH_TILE
        if b_pad != B:
            x = jnp.pad(x, ((0, b_pad - B), (0, 0)))
        out_pad = pl.pallas_call(
            _mlp_kernel,
            out_shape=jax.ShapeDtypeStruct((b_pad, HEAD_PAD), jnp.float32),
            grid=(n_steps,),
            in_specs=[
                pl.BlockSpec((BATCH_TILE, F), lambda i: (i, 0)),
                _resident_spec((F, HIDDEN_PAD)),
                _resident_spec((1, HIDDEN_PAD)),
                _resident_spec((HIDDEN_PAD, HIDDEN_PAD)),
                _resident_spec((1, HIDDEN_PAD)),
                _resident_spec((HIDDEN_PAD, HEAD_PAD)),
                _resident_spec((1, HEAD_PAD)),
            ],
            out_specs=pl.BlockSpec((BATCH_TILE, HEAD_PAD), lambda i: (i, 0)),
            compiler_params=pltpu.CompilerParams(
                dimension_semantics=("parallel",),
                vmem_limit_bytes=VMEM_LIMIT),
        )(x, w1p, b1p, w2p, b2p, whp, bhp)

    head = out_pad[:B, :2]          # single slice of the padded result
    return head[:, 0:1], head[:, 1:2]


def init_params(key, input_size):
    """Deterministic init mimicking PyTorch Linear's U(-1/sqrt(fan_in), ...).
    Weights stored transposed as (in_features, out_features)."""
    def linear(key, fan_in, fan_out):
        kw, kb = jax.random.split(key)
        bound = 1.0 / jnp.sqrt(fan_in)
        w = jax.random.uniform(kw, (fan_in, fan_out), jnp.float32, -bound, bound)
        b = jax.random.uniform(kb, (1, fan_out), jnp.float32, -bound, bound)
        return w, b

    k1, k2, k3, k4 = jax.random.split(key, 4)
    w1, b1 = linear(k1, input_size, HIDDEN)
    w2, b2 = linear(k2, HIDDEN, HIDDEN)
    wm, bm = linear(k3, HIDDEN, 1)
    wv, bv = linear(k4, HIDDEN, 1)
    return (w1, b1, w2, b2, wm, bm, wv, bv)


def reference_forward(x, params):
    """Pure-JAX f32 reference (eval mode), unpadded logical weights."""
    w1, b1, w2, b2, wm, bm, wv, bv = params
    h1 = jnp.maximum(x @ w1 + b1, 0.0)
    h2 = jnp.maximum(h1 @ w2 + b2, 0.0)
    return h2 @ wm + bm, h2 @ wv + bv


if __name__ == "__main__":
    key = jax.random.PRNGKey(0)
    kx, kp, kx2 = jax.random.split(key, 3)

    input_size = 16   # Parkinsons telemonitoring feature count (small synthetic)
    params = init_params(kp, input_size)

    # --- 1) tiny batch, exact f32 path (matches PyTorch eval forward to 1e-5) ---
    batch = 8
    x = jax.random.normal(kx, (batch, input_size), jnp.float32)
    kparams_f32 = prepare_params(params, jnp.float32)
    mean, log_var = ffc_regression_parkinsons(x, kparams_f32)
    mean = jax.block_until_ready(mean)
    log_var = jax.block_until_ready(log_var)

    ref_mean, ref_log_var = reference_forward(x, params)
    assert mean.shape == (batch, 1) and log_var.shape == (batch, 1)
    assert jnp.allclose(mean, ref_mean, atol=1e-5, rtol=1e-5)
    assert jnp.allclose(log_var, ref_log_var, atol=1e-5, rtol=1e-5)

    # --- 2) larger ragged batch, bf16-operand fast path through the grid ---
    batch2 = 600  # not a multiple of BATCH_TILE -> exercises pad + grid path
    x2 = jax.random.normal(kx2, (batch2, input_size), jnp.float32)
    kparams_bf16 = prepare_params(params, jnp.bfloat16)
    mean2, log_var2 = ffc_regression_parkinsons(x2, kparams_bf16)
    mean2 = jax.block_until_ready(mean2)
    log_var2 = jax.block_until_ready(log_var2)

    ref_mean2, ref_log_var2 = reference_forward(x2, params)
    assert mean2.shape == (batch2, 1) and log_var2.shape == (batch2, 1)
    # bf16 MXU operands with f32 accumulation: loose tolerance vs f32 reference.
    assert jnp.allclose(mean2, ref_mean2, atol=1e-1, rtol=1e-1)
    assert jnp.allclose(log_var2, ref_log_var2, atol=1e-1, rtol=1e-1)

    print("KERNEL_OK")
</pallas_src>

<mosaic_0001>
module attributes {stable_mosaic.version = 11 : i64} {
  func.func @_mlp_kernel(%arg0: memref<8x16xf32, #tpu.memory_space<vmem>>, %arg1: memref<16x512xf32, #tpu.memory_space<vmem>>, %arg2: memref<1x512xf32, #tpu.memory_space<vmem>>, %arg3: memref<512x512xf32, #tpu.memory_space<vmem>>, %arg4: memref<1x512xf32, #tpu.memory_space<vmem>>, %arg5: memref<512x128xf32, #tpu.memory_space<vmem>>, %arg6: memref<1x128xf32, #tpu.memory_space<vmem>>, %arg7: memref<8x128xf32, #tpu.memory_space<vmem>>) attributes {dimension_semantics = [], scalar_prefetch = 0 : i64, scratch_operands = 0 : i64, tpu.core_type = #tpu.core_type<tc>} {
    %c0 = arith.constant 0 : index
    %c0_0 = arith.constant 0 : index
    %0 = vector.load %arg0[%c0, %c0_0] : memref<8x16xf32, #tpu.memory_space<vmem>>, vector<8x16xf32>
    %c0_1 = arith.constant 0 : index
    %c0_2 = arith.constant 0 : index
    %1 = vector.load %arg1[%c0_1, %c0_2] : memref<16x512xf32, #tpu.memory_space<vmem>>, vector<16x512xf32>
    %cst = arith.constant dense<0.000000e+00> : vector<8x512xf32>
    %2 = tpu.matmul %0, %1, %cst {dimension_numbers = #tpu.dot_dimension_numbers<[1], [0], [0], [1], [0, 0, 1, 1], [], []>} : vector<8x16xf32>, vector<16x512xf32>, vector<8x512xf32> -> vector<8x512xf32>
    %c0_3 = arith.constant 0 : index
    %c0_4 = arith.constant 0 : index
    %3 = vector.load %arg2[%c0_3, %c0_4] : memref<1x512xf32, #tpu.memory_space<vmem>>, vector<1x512xf32>
    %4 = vector.broadcast %3 : vector<1x512xf32> to vector<8x512xf32>
    %5 = arith.addf %2, %4 : vector<8x512xf32>
    %cst_5 = arith.constant 0.000000e+00 : f32
    %6 = vector.broadcast %cst_5 : f32 to vector<8x512xf32>
    %7 = arith.maximumf %5, %6 : vector<8x512xf32>
    %c0_6 = arith.constant 0 : index
    %c0_7 = arith.constant 0 : index
    %8 = vector.load %arg3[%c0_6, %c0_7] : memref<512x512xf32, #tpu.memory_space<vmem>>, vector<512x512xf32>
    %cst_8 = arith.constant dense<0.000000e+00> : vector<8x512xf32>
    %9 = tpu.matmul %7, %8, %cst_8 {dimension_numbers = #tpu.dot_dimension_numbers<[1], [0], [0], [1], [0, 0, 1, 1], [], []>} : vector<8x512xf32>, vector<512x512xf32>, vector<8x512xf32> -> vector<8x512xf32>
    %c0_9 = arith.constant 0 : index
    %c0_10 = arith.constant 0 : index
    %10 = vector.load %arg4[%c0_9, %c0_10] : memref<1x512xf32, #tpu.memory_space<vmem>>, vector<1x512xf32>
    %11 = vector.broadcast %10 : vector<1x512xf32> to vector<8x512xf32>
    %12 = arith.addf %9, %11 : vector<8x512xf32>
    %cst_11 = arith.constant 0.000000e+00 : f32
    %13 = vector.broadcast %cst_11 : f32 to vector<8x512xf32>
    %14 = arith.maximumf %12, %13 : vector<8x512xf32>
    %c0_12 = arith.constant 0 : index
    %c0_13 = arith.constant 0 : index
    %15 = vector.load %arg5[%c0_12, %c0_13] : memref<512x128xf32, #tpu.memory_space<vmem>>, vector<512x128xf32>
    %cst_14 = arith.constant dense<0.000000e+00> : vector<8x128xf32>
    %16 = tpu.matmul %14, %15, %cst_14 {dimension_numbers = #tpu.dot_dimension_numbers<[1], [0], [0], [1], [0, 0, 1, 1], [], []>} : vector<8x512xf32>, vector<512x128xf32>, vector<8x128xf32> -> vector<8x128xf32>
    %c0_15 = arith.constant 0 : index
    %c0_16 = arith.constant 0 : index
    %17 = vector.load %arg6[%c0_15, %c0_16] : memref<1x128xf32, #tpu.memory_space<vmem>>, vector<1x128xf32>
    %18 = vector.broadcast %17 : vector<1x128xf32> to vector<8x128xf32>
    %19 = arith.addf %16, %18 : vector<8x128xf32>
    %c0_17 = arith.constant 0 : index
    %c0_18 = arith.constant 0 : index
    %20 = vector.load %arg7[%c0_17, %c0_18] : memref<8x128xf32, #tpu.memory_space<vmem>>, vector<8x128xf32>
    tpu.vector_store %arg7[%c0_17, %c0_18], %19 {strides = array<i32>} : memref<8x128xf32, #tpu.memory_space<vmem>>, vector<8x128xf32>,
    return
  }
}

</mosaic_0001>

<llo_original>
// kernel: ffc_regression_parkinsons.1
$region0: #{ffc_regression_parkinsons.1}
  #allocation0 [shape = 'u32[]', space=smem, size = 0x4, offset = 0x4, fixed_abs, tag = 'smem constant byte address 0x4 - core index']
  #allocation1 [shape = 'u32[72,128]{1,0:T(1,128)}', space=vmem, size = 0x9000, scoped, tag = 'internal scratch']
  %s0 = inlined_call_operand.hbm [shape: f32[8,16], index: 0, kind: input, shape index: {}]
  %s1 = inlined_call_operand.hbm [shape: f32[16,512], index: 1, kind: input, shape index: {}]
  %s2 = inlined_call_operand.hbm [shape: f32[1,512], index: 2, kind: input, shape index: {}]
  %s3 = inlined_call_operand.hbm [shape: f32[512,512], index: 3, kind: input, shape index: {}]
  %s4 = inlined_call_operand.hbm [shape: f32[1,512], index: 4, kind: input, shape index: {}]
  %s5 = inlined_call_operand.hbm [shape: f32[512,128], index: 5, kind: input, shape index: {}]
  %s6 = inlined_call_operand.vmem [shape: f32[1,128], index: 6, kind: input, shape index: {}]
  %s7 = inlined_call_operand.vmem [shape: f32[8,128], index: 7, kind: output, shape index: {}]
  %s8 = sld [smem:[#allocation0]]
  $region62: #{ffc_regression_parkinsons.1} parent=0
    _
  %s10 = ssub.s32 1, %s8
  %s11 = scalar_select 0, %s10, %s8
  $region1: #{ffc_regression_parkinsons.1} parent=0
    #allocation2 [shape = 'u8[4096]{0}', space=vmem, size = 0x1000, scoped, tag = 'input window, operand 0, single buffered']
    #allocation3 [shape = 's32[1]{0}', space=sflag, size = 0x4, scoped, tag = 'scoped memory for ffc_regression_parkinsons.1']
    #allocation4 [shape = 'u8[32768]{0}', space=vmem, size = 0x8000, scoped, tag = 'input window, operand 1, single buffered']
    #allocation5 [shape = 's32[1]{0}', space=sflag, size = 0x4, scoped, tag = 'scoped memory for ffc_regression_parkinsons.1']
    #allocation6 [shape = 'u8[2048]{0}', space=vmem, size = 0x800, scoped, tag = 'input window, operand 2, single buffered']
    #allocation7 [shape = 'u8[1048576]{0}', space=vmem, size = 0x100000, scoped, tag = 'input window, operand 3, single buffered']
    #allocation8 [shape = 's32[1]{0}', space=sflag, size = 0x4, scoped, tag = 'scoped memory for ffc_regression_parkinsons.1']
    #allocation9 [shape = 'u8[2048]{0}', space=vmem, size = 0x800, scoped, tag = 'input window, operand 4, single buffered']
    #allocation10 [shape = 'u8[262144]{0}', space=vmem, size = 0x40000, scoped, tag = 'input window, operand 5, single buffered']
    #allocation11 [shape = 's32[1]{0}', space=sflag, size = 0x4, scoped, tag = 'scoped memory for ffc_regression_parkinsons.1']
    %12 = vsyncpa [#allocation3], 0
    %13 = vsyncpa [#allocation5], 0
    %14 = vsyncpa [#allocation8], 0
    %15 = vsyncpa [#allocation11], 0
    // Predicated region
    $region2: #{ffc_regression_parkinsons.1} parent=1 // pred_check
      _
    $region3: #{ffc_regression_parkinsons.1} parent=1 // pred_check_branch
      %17 = sbr.rel (0) target = $region5
    $region4: #{ffc_regression_parkinsons.1} parent=1 // pred_region
      %19 = vsyncadd [#allocation3], 0
      %s21 = sshll.u32 %s0, 4
      %s22 = int_to_ptr.hbm [resolvable:$true] %s21
      %s23 = sshll.u32 [#allocation2], 4
      %s24 = int_to_ptr.vmem [resolvable:$true] %s23
      %26 = dma.hbm_to_vmem [thread:$0]  %s22, 128, %s24, [#allocation3]
    $region5: #{ffc_regression_parkinsons.1} parent=1 // pred_fallthru
      _
    // Predicated region
    $region6: #{ffc_regression_parkinsons.1} parent=1 // pred_check
      _
    $region7: #{ffc_regression_parkinsons.1} parent=1 // pred_check_branch
      %28 = sbr.rel (0) target = $region9
    $region8: #{ffc_regression_parkinsons.1} parent=1 // pred_region
      %30 = vsyncadd [#allocation5], 0
      %s31 = sshll.u32 %s1, 4
      %s32 = int_to_ptr.hbm [resolvable:$true] %s31
      %s33 = sshll.u32 [#allocation4], 4
      %s34 = int_to_ptr.vmem [resolvable:$true] %s33
      %39 = dma.hbm_to_vmem [thread:$0]  %s32, 1024, %s34, [#allocation5], 512, 512, 32
    $region9: #{ffc_regression_parkinsons.1} parent=1 // pred_fallthru
      _
    // Predicated region
    $region10: #{ffc_regression_parkinsons.1} parent=1 // pred_check
      _
    $region11: #{ffc_regression_parkinsons.1} parent=1 // pred_check_branch
      %41 = sbr.rel (0) target = $region13
    $region12: #{ffc_regression_parkinsons.1} parent=1 // pred_region
      %43 = vsyncadd [#allocation5], 0
      %s45 = sshll.u32 %s2, 4
      %s46 = int_to_ptr.hbm [resolvable:$true] %s45
      %s47 = sshll.u32 [#allocation6], 4
      %s48 = int_to_ptr.vmem [resolvable:$true] %s47
      %50 = dma.hbm_to_vmem [thread:$0]  %s46, 64, %s48, [#allocation5]
    $region13: #{ffc_regression_parkinsons.1} parent=1 // pred_fallthru
      _
    // Predicated region
    $region14: #{ffc_regression_parkinsons.1} parent=1 // pred_check
      _
    $region15: #{ffc_regression_parkinsons.1} parent=1 // pred_check_branch
      %52 = sbr.rel (0) target = $region17
    $region16: #{ffc_regression_parkinsons.1} parent=1 // pred_region
      %54 = vsyncadd [#allocation8], 0
      %s55 = sshll.u32 %s3, 4
      %s56 = int_to_ptr.hbm [resolvable:$true] %s55
      %s57 = sshll.u32 [#allocation7], 4
      %s58 = int_to_ptr.vmem [resolvable:$true] %s57
      %63 = dma.hbm_to_vmem [thread:$0]  %s56, 32768, %s58, [#allocation8], 512, 512, 32
    $region17: #{ffc_regression_parkinsons.1} parent=1 // pred_fallthru
      _
    // Predicated region
    $region18: #{ffc_regression_parkinsons.1} parent=1 // pred_check
      _
    $region19: #{ffc_regression_parkinsons.1} parent=1 // pred_check_branch
      %65 = sbr.rel (0) target = $region21
    $region20: #{ffc_regression_parkinsons.1} parent=1 // pred_region
      %67 = vsyncadd [#allocation8], 0
      %s69 = sshll.u32 %s4, 4
      %s70 = int_to_ptr.hbm [resolvable:$true] %s69
      %s71 = sshll.u32 [#allocation9], 4
      %s72 = int_to_ptr.vmem [resolvable:$true] %s71
      %74 = dma.hbm_to_vmem [thread:$0]  %s70, 64, %s72, [#allocation8]
    $region21: #{ffc_regression_parkinsons.1} parent=1 // pred_fallthru
      _
    // Predicated region
    $region22: #{ffc_regression_parkinsons.1} parent=1 // pred_check
      _
    $region23: #{ffc_regression_parkinsons.1} parent=1 // pred_check_branch
      %76 = sbr.rel (0) target = $region25
    $region24: #{ffc_regression_parkinsons.1} parent=1 // pred_region
      %78 = vsyncadd [#allocation11], 0
      %s79 = sshll.u32 %s5, 4
      %s80 = int_to_ptr.hbm [resolvable:$true] %s79
      %s81 = sshll.u32 [#allocation10], 4
      %s82 = int_to_ptr.vmem [resolvable:$true] %s81
      %87 = dma.hbm_to_vmem [thread:$0]  %s80, 8192, %s82, [#allocation11], 128, 128, 8
    $region25: #{ffc_regression_parkinsons.1} parent=1 // pred_fallthru
      _
    // Predicated region
    $region26: #{ffc_regression_parkinsons.1} parent=1 // pred_check
      _
    $region27: #{ffc_regression_parkinsons.1} parent=1 // pred_check_branch
      %89 = sbr.rel (0) target = $region29
    $region28: #{ffc_regression_parkinsons.1} parent=1 // pred_region
      _
    $region29: #{ffc_regression_parkinsons.1} parent=1 // pred_fallthru
      _
    // Predicated region
    $region30: #{ffc_regression_parkinsons.1} parent=1 // pred_check
      _
    $region31: #{ffc_regression_parkinsons.1} parent=1 // pred_check_branch
      %91 = sbr.rel (0) target = $region33
    $region32: #{ffc_regression_parkinsons.1} parent=1 // pred_region
      %93 = dma.done [#allocation3], 128
    $region33: #{ffc_regression_parkinsons.1} parent=1 // pred_fallthru
      _
    // Predicated region
    $region34: #{ffc_regression_parkinsons.1} parent=1 // pred_check
      _
    $region35: #{ffc_regression_parkinsons.1} parent=1 // pred_check_branch
      %95 = sbr.rel (0) target = $region37
    $region36: #{ffc_regression_parkinsons.1} parent=1 // pred_region
      %97 = dma.done [#allocation5], 1024
    $region37: #{ffc_regression_parkinsons.1} parent=1 // pred_fallthru
      _
    // Predicated region
    $region38: #{ffc_regression_parkinsons.1} parent=1 // pred_check
      _
    $region39: #{ffc_regression_parkinsons.1} parent=1 // pred_check_branch
      %99 = sbr.rel (0) target = $region41
    $region40: #{ffc_regression_parkinsons.1} parent=1 // pred_region
      %101 = dma.done [#allocation5], 64
    $region41: #{ffc_regression_parkinsons.1} parent=1 // pred_fallthru
      _
    // Predicated region
    $region42: #{ffc_regression_parkinsons.1} parent=1 // pred_check
      _
    $region43: #{ffc_regression_parkinsons.1} parent=1 // pred_check_branch
      %103 = sbr.rel (0) target = $region45
    $region44: #{ffc_regression_parkinsons.1} parent=1 // pred_region
      %105 = dma.done [#allocation8], 32768
    $region45: #{ffc_regression_parkinsons.1} parent=1 // pred_fallthru
      _
    // Predicated region
    $region46: #{ffc_regression_parkinsons.1} parent=1 // pred_check
      _
    $region47: #{ffc_regression_parkinsons.1} parent=1 // pred_check_branch
      %107 = sbr.rel (0) target = $region49
    $region48: #{ffc_regression_parkinsons.1} parent=1 // pred_region
      %109 = dma.done [#allocation8], 64
    $region49: #{ffc_regression_parkinsons.1} parent=1 // pred_fallthru
      _
    // Predicated region
    $region50: #{ffc_regression_parkinsons.1} parent=1 // pred_check
      _
    $region51: #{ffc_regression_parkinsons.1} parent=1 // pred_check_branch
      %111 = sbr.rel (0) target = $region53
    $region52: #{ffc_regression_parkinsons.1} parent=1 // pred_region
      %113 = dma.done [#allocation11], 8192
    $region53: #{ffc_regression_parkinsons.1} parent=1 // pred_fallthru
      _
    %v114 = vld [vmem:[#allocation2] sm:$0xff]
    %v115 = vld [vmem:[#allocation4] sm:$0xff]
    %v116 = vld [vmem:[#allocation4 + $0x8] sm:$0xff]
    %v117 = vld [vmem:[#allocation4 + $0x10] sm:$0xff]
    %v118 = vld [vmem:[#allocation4 + $0x18] sm:$0xff]
    %v119 = vld [vmem:[#allocation4 + $0x20] sm:$0xff]
    %v120 = vld [vmem:[#allocation4 + $0x28] sm:$0xff]
    %v121 = vld [vmem:[#allocation4 + $0x30] sm:$0xff]
    %v122 = vld [vmem:[#allocation4 + $0x38] sm:$0xff]
    %v123 = vld [vmem:[#allocation6] sm:$0xf]
    %v125 = vperm.slane %v123, 0
    %v126 = vperm.slane %v123, 1
    %v127 = vperm.slane %v123, 2
    %v128 = vperm.slane %v123, 3
    %vm133 = vcmask 130048
    %v135 = vsel %vm133, %v114, 0
    %137 = vmatpush.msra.mxu0 0.0
    %138 = vmatpush.msra.mxu0 0.0
    %139 = vmatpush.msra.mxu0 0.0
    %140 = vmatpush.msra.mxu0 0.0
    %141 = vmatpush.msra.mxu0 0.0
    %142 = vmatpush.msra.mxu0 0.0
    %143 = vmatpush.msra.mxu0 0.0
    %144 = vmatpush.msra.mxu0 0.0
    %145 = vmatpush.msra.mxu0 0.0
    %146 = vmatpush.msra.mxu0 0.0
    %147 = vmatpush.msra.mxu0 0.0
    %148 = vmatpush.msra.mxu0 0.0
    %149 = vmatpush.msra.mxu0 0.0
    %150 = vmatpush.msra.mxu0 0.0
    %151 = vmatpush.msra.mxu0 %v119
    %152 = vmatpush.msra.mxu0 %v115
    %153 = vmatmul.f32.gmra.mxu0 %v135
    %v154 = vpop.f32.mrf.mxu0
    %v155 = vadd.f32 %v125, %v154
    %156 = vdwg.mxu0
    %157 = vmatpush.msra.mxu0 0.0
    %158 = vmatpush.msra.mxu0 0.0
    %159 = vmatpush.msra.mxu0 0.0
    %160 = vmatpush.msra.mxu0 0.0
    %161 = vmatpush.msra.mxu0 0.0
    %162 = vmatpush.msra.mxu0 0.0
    %163 = vmatpush.msra.mxu0 0.0
    %164 = vmatpush.msra.mxu0 0.0
    %165 = vmatpush.msra.mxu0 0.0
    %166 = vmatpush.msra.mxu0 0.0
    %167 = vmatpush.msra.mxu0 0.0
    %168 = vmatpush.msra.mxu0 0.0
    %169 = vmatpush.msra.mxu0 0.0
    %170 = vmatpush.msra.mxu0 0.0
    %171 = vmatpush.msra.mxu0 %v120
    %172 = vmatpush.msra.mxu0 %v116
    %173 = vmatmul.f32.gmra.mxu0 %v135
    %v174 = vpop.f32.mrf.mxu0
    %v175 = vadd.f32 %v126, %v174
    %176 = vdwg.mxu0
    %177 = vmatpush.msra.mxu0 0.0
    %178 = vmatpush.msra.mxu0 0.0
    %179 = vmatpush.msra.mxu0 0.0
    %180 = vmatpush.msra.mxu0 0.0
    %181 = vmatpush.msra.mxu0 0.0
    %182 = vmatpush.msra.mxu0 0.0
    %183 = vmatpush.msra.mxu0 0.0
    %184 = vmatpush.msra.mxu0 0.0
    %185 = vmatpush.msra.mxu0 0.0
    %186 = vmatpush.msra.mxu0 0.0
    %187 = vmatpush.msra.mxu0 0.0
    %188 = vmatpush.msra.mxu0 0.0
    %189 = vmatpush.msra.mxu0 0.0
    %190 = vmatpush.msra.mxu0 0.0
    %191 = vmatpush.msra.mxu0 %v121
    %192 = vmatpush.msra.mxu0 %v117
    %193 = vmatmul.f32.gmra.mxu0 %v135
    %v194 = vpop.f32.mrf.mxu0
    %v195 = vadd.f32 %v127, %v194
    %196 = vdwg.mxu0
    %197 = vmatpush.msra.mxu0 0.0
    %198 = vmatpush.msra.mxu0 0.0
    %199 = vmatpush.msra.mxu0 0.0
    %200 = vmatpush.msra.mxu0 0.0
    %201 = vmatpush.msra.mxu0 0.0
    %202 = vmatpush.msra.mxu0 0.0
    %203 = vmatpush.msra.mxu0 0.0
    %204 = vmatpush.msra.mxu0 0.0
    %205 = vmatpush.msra.mxu0 0.0
    %206 = vmatpush.msra.mxu0 0.0
    %207 = vmatpush.msra.mxu0 0.0
    %208 = vmatpush.msra.mxu0 0.0
    %209 = vmatpush.msra.mxu0 0.0
    %210 = vmatpush.msra.mxu0 0.0
    %211 = vmatpush.msra.mxu0 %v122
    %212 = vmatpush.msra.mxu0 %v118
    %213 = vmatmul.f32.gmra.mxu0 %v135
    %v214 = vpop.f32.mrf.mxu0
    %v215 = vadd.f32 %v128, %v214
    %216 = vdwg.mxu0
    %v217 = vmax.f32 %v155, 0.0
    %v218 = vmax.f32 %v175, 0.0
    %v219 = vmax.f32 %v195, 0.0
    %v220 = vmax.f32 %v215, 0.0
    %v221 = vld [vmem:[#allocation7] sm:$0xff]
    %v222 = vld [vmem:[#allocation7 + $0x8] sm:$0xff]
    %v223 = vld [vmem:[#allocation7 + $0x10] sm:$0xff]
    %v224 = vld [vmem:[#allocation7 + $0x18] sm:$0xff]
    %v225 = vld [vmem:[#allocation7 + $0x20] sm:$0xff]
    %v226 = vld [vmem:[#allocation7 + $0x28] sm:$0xff]
    %v227 = vld [vmem:[#allocation7 + $0x30] sm:$0xff]
    %v228 = vld [vmem:[#allocation7 + $0x38] sm:$0xff]
    %v229 = vld [vmem:[#allocation7 + $0x40] sm:$0xff]
    %v230 = vld [vmem:[#allocation7 + $0x48] sm:$0xff]
    %v231 = vld [vmem:[#allocation7 + $0x50] sm:$0xff]
    %v232 = vld [vmem:[#allocation7 + $0x58] sm:$0xff]
    %v233 = vld [vmem:[#allocation7 + $0x60] sm:$0xff]
    %v234 = vld [vmem:[#allocation7 + $0x68] sm:$0xff]
    %v235 = vld [vmem:[#allocation7 + $0x70] sm:$0xff]
    %v236 = vld [vmem:[#allocation7 + $0x78] sm:$0xff]
    %v237 = vld [vmem:[#allocation7 + $0x80] sm:$0xff]
    %v238 = vld [vmem:[#allocation7 + $0x88] sm:$0xff]
    %v239 = vld [vmem:[#allocation7 + $0x90] sm:$0xff]
    %v240 = vld [vmem:[#allocation7 + $0x98] sm:$0xff]
    %v241 = vld [vmem:[#allocation7 + $0xa0] sm:$0xff]
    %v242 = vld [vmem:[#allocation7 + $0xa8] sm:$0xff]
    %v243 = vld [vmem:[#allocation7 + $0xb0] sm:$0xff]
    %v244 = vld [vmem:[#allocation7 + $0xb8] sm:$0xff]
    %v245 = vld [vmem:[#allocation7 + $0xc0] sm:$0xff]
    %v246 = vld [vmem:[#allocation7 + $0xc8] sm:$0xff]
    %v247 = vld [vmem:[#allocation7 + $0xd0] sm:$0xff]
    %v248 = vld [vmem:[#allocation7 + $0xd8] sm:$0xff]
    %v249 = vld [vmem:[#allocation7 + $0xe0] sm:$0xff]
    %v250 = vld [vmem:[#allocation7 + $0xe8] sm:$0xff]
    %v251 = vld [vmem:[#allocation7 + $0xf0] sm:$0xff]
    %v252 = vld [vmem:[#allocation7 + $0xf8] sm:$0xff]
    %v253 = vld [vmem:[#allocation7 + $0x100] sm:$0xff]
    %v254 = vld [vmem:[#allocation7 + $0x108] sm:$0xff]
    %v255 = vld [vmem:[#allocation7 + $0x110] sm:$0xff]
    %v256 = vld [vmem:[#allocation7 + $0x118] sm:$0xff]
    %v257 = vld [vmem:[#allocation7 + $0x120] sm:$0xff]
    %v258 = vld [vmem:[#allocation7 + $0x128] sm:$0xff]
    %v259 = vld [vmem:[#allocation7 + $0x130] sm:$0xff]
    %v260 = vld [vmem:[#allocation7 + $0x138] sm:$0xff]
    %v261 = vld [vmem:[#allocation7 + $0x140] sm:$0xff]
    %v262 = vld [vmem:[#allocation7 + $0x148] sm:$0xff]
    %v263 = vld [vmem:[#allocation7 + $0x150] sm:$0xff]
    %v264 = vld [vmem:[#allocation7 + $0x158] sm:$0xff]
    %v265 = vld [vmem:[#allocation7 + $0x160] sm:$0xff]
    %v266 = vld [vmem:[#allocation7 + $0x168] sm:$0xff]
    %v267 = vld [vmem:[#allocation7 + $0x170] sm:$0xff]
    %v268 = vld [vmem:[#allocation7 + $0x178] sm:$0xff]
    %v269 = vld [vmem:[#allocation7 + $0x180] sm:$0xff]
    %v270 = vld [vmem:[#allocation7 + $0x188] sm:$0xff]
    %v271 = vld [vmem:[#allocation7 + $0x190] sm:$0xff]
    %v272 = vld [vmem:[#allocation7 + $0x198] sm:$0xff]
    %v273 = vld [vmem:[#allocation7 + $0x1a0] sm:$0xff]
    %v274 = vld [vmem:[#allocation7 + $0x1a8] sm:$0xff]
    %v275 = vld [vmem:[#allocation7 + $0x1b0] sm:$0xff]
    %v276 = vld [vmem:[#allocation7 + $0x1b8] sm:$0xff]
    %v277 = vld [vmem:[#allocation7 + $0x1c0] sm:$0xff]
    %v278 = vld [vmem:[#allocation7 + $0x1c8] sm:$0xff]
    %v279 = vld [vmem:[#allocation7 + $0x1d0] sm:$0xff]
    %v280 = vld [vmem:[#allocation7 + $0x1d8] sm:$0xff]
    %v281 = vld [vmem:[#allocation7 + $0x1e0] sm:$0xff]
    %v282 = vld [vmem:[#allocation7 + $0x1e8] sm:$0xff]
    %v283 = vld [vmem:[#allocation7 + $0x1f0] sm:$0xff]
    %v284 = vld [vmem:[#allocation7 + $0x1f8] sm:$0xff]
    %v285 = vld [vmem:[#allocation7 + $0x200] sm:$0xff]
    %v286 = vld [vmem:[#allocation7 + $0x208] sm:$0xff]
    %v287 = vld [vmem:[#allocation7 + $0x210] sm:$0xff]
    %v288 = vld [vmem:[#allocation7 + $0x218] sm:$0xff]
    %v289 = vld [vmem:[#allocation7 + $0x220] sm:$0xff]
    %v290 = vld [vmem:[#allocation7 + $0x228] sm:$0xff]
    %v291 = vld [vmem:[#allocation7 + $0x230] sm:$0xff]
    %v292 = vld [vmem:[#allocation7 + $0x238] sm:$0xff]
    %v293 = vld [vmem:[#allocation7 + $0x240] sm:$0xff]
    %v294 = vld [vmem:[#allocation7 + $0x248] sm:$0xff]
    %v295 = vld [vmem:[#allocation7 + $0x250] sm:$0xff]
    %v296 = vld [vmem:[#allocation7 + $0x258] sm:$0xff]
    %v297 = vld [vmem:[#allocation7 + $0x260] sm:$0xff]
    %v298 = vld [vmem:[#allocation7 + $0x268] sm:$0xff]
    %v299 = vld [vmem:[#allocation7 + $0x270] sm:$0xff]
    %v300 = vld [vmem:[#allocation7 + $0x278] sm:$0xff]
    %v301 = vld [vmem:[#allocation7 + $0x280] sm:$0xff]
    %v302 = vld [vmem:[#allocation7 + $0x288] sm:$0xff]
    %v303 = vld [vmem:[#allocation7 + $0x290] sm:$0xff]
    %v304 = vld [vmem:[#allocation7 + $0x298] sm:$0xff]
    %v305 = vld [vmem:[#allocation7 + $0x2a0] sm:$0xff]
    %v306 = vld [vmem:[#allocation7 + $0x2a8] sm:$0xff]
    %v307 = vld [vmem:[#allocation7 + $0x2b0] sm:$0xff]
    %v308 = vld [vmem:[#allocation7 + $0x2b8] sm:$0xff]
    %v309 = vld [vmem:[#allocation7 + $0x2c0] sm:$0xff]
    %v310 = vld [vmem:[#allocation7 + $0x2c8] sm:$0xff]
    %v311 = vld [vmem:[#allocation7 + $0x2d0] sm:$0xff]
    %v312 = vld [vmem:[#allocation7 + $0x2d8] sm:$0xff]
    %v313 = vld [vmem:[#allocation7 + $0x2e0] sm:$0xff]
    %v314 = vld [vmem:[#allocation7 + $0x2e8] sm:$0xff]
    %v315 = vld [vmem:[#allocation7 + $0x2f0] sm:$0xff]
    %v316 = vld [vmem:[#allocation7 + $0x2f8] sm:$0xff]
    %v317 = vld [vmem:[#allocation7 + $0x300] sm:$0xff]
    %v318 = vld [vmem:[#allocation7 + $0x308] sm:$0xff]
    %v319 = vld [vmem:[#allocation7 + $0x310] sm:$0xff]
    %v320 = vld [vmem:[#allocation7 + $0x318] sm:$0xff]
    %v321 = vld [vmem:[#allocation7 + $0x320] sm:$0xff]
    %v322 = vld [vmem:[#allocation7 + $0x328] sm:$0xff]
    %v323 = vld [vmem:[#allocation7 + $0x330] sm:$0xff]
    %v324 = vld [vmem:[#allocation7 + $0x338] sm:$0xff]
    %v325 = vld [vmem:[#allocation7 + $0x340] sm:$0xff]
    %v326 = vld [vmem:[#allocation7 + $0x348] sm:$0xff]
    %v327 = vld [vmem:[#allocation7 + $0x350] sm:$0xff]
    %v328 = vld [vmem:[#allocation7 + $0x358] sm:$0xff]
    %v329 = vld [vmem:[#allocation7 + $0x360] sm:$0xff]
    %v330 = vld [vmem:[#allocation7 + $0x368] sm:$0xff]
    %v331 = vld [vmem:[#allocation7 + $0x370] sm:$0xff]
    %v332 = vld [vmem:[#allocation7 + $0x378] sm:$0xff]
    %v333 = vld [vmem:[#allocation7 + $0x380] sm:$0xff]
    %v334 = vld [vmem:[#allocation7 + $0x388] sm:$0xff]
    %v335 = vld [vmem:[#allocation7 + $0x390] sm:$0xff]
    %v336 = vld [vmem:[#allocation7 + $0x398] sm:$0xff]
    %v337 = vld [vmem:[#allocation7 + $0x3a0] sm:$0xff]
    %v338 = vld [vmem:[#allocation7 + $0x3a8] sm:$0xff]
    %v339 = vld [vmem:[#allocation7 + $0x3b0] sm:$0xff]
    %v340 = vld [vmem:[#allocation7 + $0x3b8] sm:$0xff]
    %v341 = vld [vmem:[#allocation7 + $0x3c0] sm:$0xff]
    %v342 = vld [vmem:[#allocation7 + $0x3c8] sm:$0xff]
    %v343 = vld [vmem:[#allocation7 + $0x3d0] sm:$0xff]
    %v344 = vld [vmem:[#allocation7 + $0x3d8] sm:$0xff]
    %v345 = vld [vmem:[#allocation7 + $0x3e0] sm:$0xff]
    %v346 = vld [vmem:[#allocation7 + $0x3e8] sm:$0xff]
    %v347 = vld [vmem:[#allocation7 + $0x3f0] sm:$0xff]
    %v348 = vld [vmem:[#allocation7 + $0x3f8] sm:$0xff]
    %v349 = vld [vmem:[#allocation7 + $0x400] sm:$0xff]
    %v350 = vld [vmem:[#allocation7 + $0x408] sm:$0xff]
    %v351 = vld [vmem:[#allocation7 + $0x410] sm:$0xff]
    %v352 = vld [vmem:[#allocation7 + $0x418] sm:$0xff]
    %v353 = vld [vmem:[#allocation7 + $0x420] sm:$0xff]
    %v354 = vld [vmem:[#allocation7 + $0x428] sm:$0xff]
    %v355 = vld [vmem:[#allocation7 + $0x430] sm:$0xff]
    %v356 = vld [vmem:[#allocation7 + $0x438] sm:$0xff]
    %v357 = vld [vmem:[#allocation7 + $0x440] sm:$0xff]
    %v358 = vld [vmem:[#allocation7 + $0x448] sm:$0xff]
    %v359 = vld [vmem:[#allocation7 + $0x450] sm:$0xff]
    %v360 = vld [vmem:[#allocation7 + $0x458] sm:$0xff]
    %v361 = vld [vmem:[#allocation7 + $0x460] sm:$0xff]
    %v362 = vld [vmem:[#allocation7 + $0x468] sm:$0xff]
    %v363 = vld [vmem:[#allocation7 + $0x470] sm:$0xff]
    %v364 = vld [vmem:[#allocation7 + $0x478] sm:$0xff]
    %v365 = vld [vmem:[#allocation7 + $0x480] sm:$0xff]
    %v366 = vld [vmem:[#allocation7 + $0x488] sm:$0xff]
    %v367 = vld [vmem:[#allocation7 + $0x490] sm:$0xff]
    %v368 = vld [vmem:[#allocation7 + $0x498] sm:$0xff]
    %v369 = vld [vmem:[#allocation7 + $0x4a0] sm:$0xff]
    %v370 = vld [vmem:[#allocation7 + $0x4a8] sm:$0xff]
    %v371 = vld [vmem:[#allocation7 + $0x4b0] sm:$0xff]
    %v372 = vld [vmem:[#allocation7 + $0x4b8] sm:$0xff]
    %v373 = vld [vmem:[#allocation7 + $0x4c0] sm:$0xff]
    %v374 = vld [vmem:[#allocation7 + $0x4c8] sm:$0xff]
    %v375 = vld [vmem:[#allocation7 + $0x4d0] sm:$0xff]
    %v376 = vld [vmem:[#allocation7 + $0x4d8] sm:$0xff]
    %v377 = vld [vmem:[#allocation7 + $0x4e0] sm:$0xff]
    %v378 = vld [vmem:[#allocation7 + $0x4e8] sm:$0xff]
    %v379 = vld [vmem:[#allocation7 + $0x4f0] sm:$0xff]
    %v380 = vld [vmem:[#allocation7 + $0x4f8] sm:$0xff]
    %v381 = vld [vmem:[#allocation7 + $0x500] sm:$0xff]
    %v382 = vld [vmem:[#allocation7 + $0x508] sm:$0xff]
    %v383 = vld [vmem:[#allocation7 + $0x510] sm:$0xff]
    %v384 = vld [vmem:[#allocation7 + $0x518] sm:$0xff]
    %v385 = vld [vmem:[#allocation7 + $0x520] sm:$0xff]
    %v386 = vld [vmem:[#allocation7 + $0x528] sm:$0xff]
    %v387 = vld [vmem:[#allocation7 + $0x530] sm:$0xff]
    %v388 = vld [vmem:[#allocation7 + $0x538] sm:$0xff]
    %v389 = vld [vmem:[#allocation7 + $0x540] sm:$0xff]
    %v390 = vld [vmem:[#allocation7 + $0x548] sm:$0xff]
    %v391 = vld [vmem:[#allocation7 + $0x550] sm:$0xff]
    %v392 = vld [vmem:[#allocation7 + $0x558] sm:$0xff]
    %v393 = vld [vmem:[#allocation7 + $0x560] sm:$0xff]
    %v394 = vld [vmem:[#allocation7 + $0x568] sm:$0xff]
    %v395 = vld [vmem:[#allocation7 + $0x570] sm:$0xff]
    %v396 = vld [vmem:[#allocation7 + $0x578] sm:$0xff]
    %v397 = vld [vmem:[#allocation7 + $0x580] sm:$0xff]
    %v398 = vld [vmem:[#allocation7 + $0x588] sm:$0xff]
    %v399 = vld [vmem:[#allocation7 + $0x590] sm:$0xff]
    %v400 = vld [vmem:[#allocation7 + $0x598] sm:$0xff]
    %v401 = vld [vmem:[#allocation7 + $0x5a0] sm:$0xff]
    %v402 = vld [vmem:[#allocation7 + $0x5a8] sm:$0xff]
    %v403 = vld [vmem:[#allocation7 + $0x5b0] sm:$0xff]
    %v404 = vld [vmem:[#allocation7 + $0x5b8] sm:$0xff]
    %v405 = vld [vmem:[#allocation7 + $0x5c0] sm:$0xff]
    %v406 = vld [vmem:[#allocation7 + $0x5c8] sm:$0xff]
    %v407 = vld [vmem:[#allocation7 + $0x5d0] sm:$0xff]
    %v408 = vld [vmem:[#allocation7 + $0x5d8] sm:$0xff]
    %v409 = vld [vmem:[#allocation7 + $0x5e0] sm:$0xff]
    %v410 = vld [vmem:[#allocation7 + $0x5e8] sm:$0xff]
    %v411 = vld [vmem:[#allocation7 + $0x5f0] sm:$0xff]
    %v412 = vld [vmem:[#allocation7 + $0x5f8] sm:$0xff]
    %v413 = vld [vmem:[#allocation7 + $0x600] sm:$0xff]
    %v414 = vld [vmem:[#allocation7 + $0x608] sm:$0xff]
    %v415 = vld [vmem:[#allocation7 + $0x610] sm:$0xff]
    %v416 = vld [vmem:[#allocation7 + $0x618] sm:$0xff]
    %v417 = vld [vmem:[#allocation7 + $0x620] sm:$0xff]
    %v418 = vld [vmem:[#allocation7 + $0x628] sm:$0xff]
    %v419 = vld [vmem:[#allocation7 + $0x630] sm:$0xff]
    %v420 = vld [vmem:[#allocation7 + $0x638] sm:$0xff]
    %v421 = vld [vmem:[#allocation7 + $0x640] sm:$0xff]
    %v422 = vld [vmem:[#allocation7 + $0x648] sm:$0xff]
    %v423 = vld [vmem:[#allocation7 + $0x650] sm:$0xff]
    %v424 = vld [vmem:[#allocation7 + $0x658] sm:$0xff]
    %v425 = vld [vmem:[#allocation7 + $0x660] sm:$0xff]
    %v426 = vld [vmem:[#allocation7 + $0x668] sm:$0xff]
    %v427 = vld [vmem:[#allocation7 + $0x670] sm:$0xff]
    %v428 = vld [vmem:[#allocation7 + $0x678] sm:$0xff]
    %v429 = vld [vmem:[#allocation7 + $0x680] sm:$0xff]
    %v430 = vld [vmem:[#allocation7 + $0x688] sm:$0xff]
    %v431 = vld [vmem:[#allocation7 + $0x690] sm:$0xff]
    %v432 = vld [vmem:[#allocation7 + $0x698] sm:$0xff]
    %v433 = vld [vmem:[#allocation7 + $0x6a0] sm:$0xff]
    %v434 = vld [vmem:[#allocation7 + $0x6a8] sm:$0xff]
    %v435 = vld [vmem:[#allocation7 + $0x6b0] sm:$0xff]
    %v436 = vld [vmem:[#allocation7 + $0x6b8] sm:$0xff]
    %v437 = vld [vmem:[#allocation7 + $0x6c0] sm:$0xff]
    %v438 = vld [vmem:[#allocation7 + $0x6c8] sm:$0xff]
    %v439 = vld [vmem:[#allocation7 + $0x6d0] sm:$0xff]
    %v440 = vld [vmem:[#allocation7 + $0x6d8] sm:$0xff]
    %v441 = vld [vmem:[#allocation7 + $0x6e0] sm:$0xff]
    %v442 = vld [vmem:[#allocation7 + $0x6e8] sm:$0xff]
    %v443 = vld [vmem:[#allocation7 + $0x6f0] sm:$0xff]
    %v444 = vld [vmem:[#allocation7 + $0x6f8] sm:$0xff]
    %v445 = vld [vmem:[#allocation7 + $0x700] sm:$0xff]
    %v446 = vld [vmem:[#allocation7 + $0x708] sm:$0xff]
    %v447 = vld [vmem:[#allocation7 + $0x710] sm:$0xff]
    %v448 = vld [vmem:[#allocation7 + $0x718] sm:$0xff]
    %v449 = vld [vmem:[#allocation7 + $0x720] sm:$0xff]
    %v450 = vld [vmem:[#allocation7 + $0x728] sm:$0xff]
    %v451 = vld [vmem:[#allocation7 + $0x730] sm:$0xff]
    %v452 = vld [vmem:[#allocation7 + $0x738] sm:$0xff]
    %v453 = vld [vmem:[#allocation7 + $0x740] sm:$0xff]
    %v454 = vld [vmem:[#allocation7 + $0x748] sm:$0xff]
    %v455 = vld [vmem:[#allocation7 + $0x750] sm:$0xff]
    %v456 = vld [vmem:[#allocation7 + $0x758] sm:$0xff]
    %v457 = vld [vmem:[#allocation7 + $0x760] sm:$0xff]
    %v458 = vld [vmem:[#allocation7 + $0x768] sm:$0xff]
    %v459 = vld [vmem:[#allocation7 + $0x770] sm:$0xff]
    %v460 = vld [vmem:[#allocation7 + $0x778] sm:$0xff]
    %v461 = vld [vmem:[#allocation7 + $0x780] sm:$0xff]
    %v462 = vld [vmem:[#allocation7 + $0x788] sm:$0xff]
    %v463 = vld [vmem:[#allocation7 + $0x790] sm:$0xff]
    %v464 = vld [vmem:[#allocation7 + $0x798] sm:$0xff]
    %v465 = vld [vmem:[#allocation7 + $0x7a0] sm:$0xff]
    %v466 = vld [vmem:[#allocation7 + $0x7a8] sm:$0xff]
    %v467 = vld [vmem:[#allocation7 + $0x7b0] sm:$0xff]
    %v468 = vld [vmem:[#allocation7 + $0x7b8] sm:$0xff]
    %v469 = vld [vmem:[#allocation7 + $0x7c0] sm:$0xff]
    %v470 = vld [vmem:[#allocation7 + $0x7c8] sm:$0xff]
    %v471 = vld [vmem:[#allocation7 + $0x7d0] sm:$0xff]
    %v472 = vld [vmem:[#allocation7 + $0x7d8] sm:$0xff]
    %v473 = vld [vmem:[#allocation7 + $0x7e0] sm:$0xff]
    %v474 = vld [vmem:[#allocation7 + $0x7e8] sm:$0xff]
    %v475 = vld [vmem:[#allocation7 + $0x7f0] sm:$0xff]
    %v476 = vld [vmem:[#allocation7 + $0x7f8] sm:$0xff]
    %v477 = vld [vmem:[#allocation9] sm:$0xf]
    %v479 = vperm.slane %v477, 0
    %v480 = vperm.slane %v477, 1
    %v481 = vperm.slane %v477, 2
    %v482 = vperm.slane %v477, 3
    %487 = vmatpush.msra.mxu0 %v281
    %488 = vmatpush.msra.mxu0 %v277
    %489 = vmatpush.msra.mxu0 %v273
    %490 = vmatpush.msra.mxu0 %v269
    %491 = vmatpush.msra.mxu0 %v265
    %492 = vmatpush.msra.mxu0 %v261
    %493 = vmatpush.msra.mxu0 %v257
    %494 = vmatpush.msra.mxu0 %v253
    %495 = vmatpush.msra.mxu0 %v249
    %496 = vmatpush.msra.mxu0 %v245
    %497 = vmatpush.msra.mxu0 %v241
    %498 = vmatpush.msra.mxu0 %v237
    %499 = vmatpush.msra.mxu0 %v233
    %500 = vmatpush.msra.mxu0 %v229
    %501 = vmatpush.msra.mxu0 %v225
    %502 = vmatpush.msra.mxu0 %v221
    %503 = vmatmul.f32.gmra.mxu0 %v217
    %v504 = vpop.f32.mrf.mxu0
    %v505 = vadd.f32 %v479, %v504
    %506 = vdwg.mxu0
    %507 = vmatpush.msra.mxu0 %v345
    %508 = vmatpush.msra.mxu0 %v341
    %509 = vmatpush.msra.mxu0 %v337
    %510 = vmatpush.msra.mxu0 %v333
    %511 = vmatpush.msra.mxu0 %v329
    %512 = vmatpush.msra.mxu0 %v325
    %513 = vmatpush.msra.mxu0 %v321
    %514 = vmatpush.msra.mxu0 %v317
    %515 = vmatpush.msra.mxu0 %v313
    %516 = vmatpush.msra.mxu0 %v309
    %517 = vmatpush.msra.mxu0 %v305
    %518 = vmatpush.msra.mxu0 %v301
    %519 = vmatpush.msra.mxu0 %v297
    %520 = vmatpush.msra.mxu0 %v293
    %521 = vmatpush.msra.mxu0 %v289
    %522 = vmatpush.msra.mxu0 %v285
    %523 = vmatmul.f32.gmra.mxu0 %v218
    %v524 = vpop.f32.mrf.mxu0
    %v525 = vadd.f32 %v505, %v524
    %526 = vdwg.mxu0
    %527 = vmatpush.msra.mxu0 %v409
    %528 = vmatpush.msra.mxu0 %v405
    %529 = vmatpush.msra.mxu0 %v401
    %530 = vmatpush.msra.mxu0 %v397
    %531 = vmatpush.msra.mxu0 %v393
    %532 = vmatpush.msra.mxu0 %v389
    %533 = vmatpush.msra.mxu0 %v385
    %534 = vmatpush.msra.mxu0 %v381
    %535 = vmatpush.msra.mxu0 %v377
    %536 = vmatpush.msra.mxu0 %v373
    %537 = vmatpush.msra.mxu0 %v369
    %538 = vmatpush.msra.mxu0 %v365
    %539 = vmatpush.msra.mxu0 %v361
    %540 = vmatpush.msra.mxu0 %v357
    %541 = vmatpush.msra.mxu0 %v353
    %542 = vmatpush.msra.mxu0 %v349
    %543 = vmatmul.f32.gmra.mxu0 %v219
    %v544 = vpop.f32.mrf.mxu0
    %v545 = vadd.f32 %v525, %v544
    %546 = vdwg.mxu0
    %547 = vmatpush.msra.mxu0 %v473
    %548 = vmatpush.msra.mxu0 %v469
    %549 = vmatpush.msra.mxu0 %v465
    %550 = vmatpush.msra.mxu0 %v461
    %551 = vmatpush.msra.mxu0 %v457
    %552 = vmatpush.msra.mxu0 %v453
    %553 = vmatpush.msra.mxu0 %v449
    %554 = vmatpush.msra.mxu0 %v445
    %555 = vmatpush.msra.mxu0 %v441
    %556 = vmatpush.msra.mxu0 %v437
    %557 = vmatpush.msra.mxu0 %v433
    %558 = vmatpush.msra.mxu0 %v429
    %559 = vmatpush.msra.mxu0 %v425
    %560 = vmatpush.msra.mxu0 %v421
    %561 = vmatpush.msra.mxu0 %v417
    %562 = vmatpush.msra.mxu0 %v413
    %563 = vmatmul.f32.gmra.mxu0 %v220
    %v564 = vpop.f32.mrf.mxu0
    %v565 = vadd.f32 %v545, %v564
    %566 = vdwg.mxu0
    %567 = vmatpush.msra.mxu0 %v282
    %568 = vmatpush.msra.mxu0 %v278
    %569 = vmatpush.msra.mxu0 %v274
    %570 = vmatpush.msra.mxu0 %v270
    %571 = vmatpush.msra.mxu0 %v266
    %572 = vmatpush.msra.mxu0 %v262
    %573 = vmatpush.msra.mxu0 %v258
    %574 = vmatpush.msra.mxu0 %v254
    %575 = vmatpush.msra.mxu0 %v250
    %576 = vmatpush.msra.mxu0 %v246
    %577 = vmatpush.msra.mxu0 %v242
    %578 = vmatpush.msra.mxu0 %v238
    %579 = vmatpush.msra.mxu0 %v234
    %580 = vmatpush.msra.mxu0 %v230
    %581 = vmatpush.msra.mxu0 %v226
    %582 = vmatpush.msra.mxu0 %v222
    %583 = vmatmul.f32.gmra.mxu0 %v217
    %v584 = vpop.f32.mrf.mxu0
    %v585 = vadd.f32 %v480, %v584
    %586 = vdwg.mxu0
    %587 = vmatpush.msra.mxu0 %v346
    %588 = vmatpush.msra.mxu0 %v342
    %589 = vmatpush.msra.mxu0 %v338
    %590 = vmatpush.msra.mxu0 %v334
    %591 = vmatpush.msra.mxu0 %v330
    %592 = vmatpush.msra.mxu0 %v326
    %593 = vmatpush.msra.mxu0 %v322
    %594 = vmatpush.msra.mxu0 %v318
    %595 = vmatpush.msra.mxu0 %v314
    %596 = vmatpush.msra.mxu0 %v310
    %597 = vmatpush.msra.mxu0 %v306
    %598 = vmatpush.msra.mxu0 %v302
    %599 = vmatpush.msra.mxu0 %v298
    %600 = vmatpush.msra.mxu0 %v294
    %601 = vmatpush.msra.mxu0 %v290
    %602 = vmatpush.msra.mxu0 %v286
    %603 = vmatmul.f32.gmra.mxu0 %v218
    %v604 = vpop.f32.mrf.mxu0
    %v605 = vadd.f32 %v585, %v604
    %606 = vdwg.mxu0
    %607 = vmatpush.msra.mxu0 %v410
    %608 = vmatpush.msra.mxu0 %v406
    %609 = vmatpush.msra.mxu0 %v402
    %610 = vmatpush.msra.mxu0 %v398
    %611 = vmatpush.msra.mxu0 %v394
    %612 = vmatpush.msra.mxu0 %v390
    %613 = vmatpush.msra.mxu0 %v386
    %614 = vmatpush.msra.mxu0 %v382
    %615 = vmatpush.msra.mxu0 %v378
    %616 = vmatpush.msra.mxu0 %v374
    %617 = vmatpush.msra.mxu0 %v370
    %618 = vmatpush.msra.mxu0 %v366
    %619 = vmatpush.msra.mxu0 %v362
    %620 = vmatpush.msra.mxu0 %v358
    %621 = vmatpush.msra.mxu0 %v354
    %622 = vmatpush.msra.mxu0 %v350
    %623 = vmatmul.f32.gmra.mxu0 %v219
    %v624 = vpop.f32.mrf.mxu0
    %v625 = vadd.f32 %v605, %v624
    %626 = vdwg.mxu0
    %627 = vmatpush.msra.mxu0 %v474
    %628 = vmatpush.msra.mxu0 %v470
    %629 = vmatpush.msra.mxu0 %v466
    %630 = vmatpush.msra.mxu0 %v462
    %631 = vmatpush.msra.mxu0 %v458
    %632 = vmatpush.msra.mxu0 %v454
    %633 = vmatpush.msra.mxu0 %v450
    %634 = vmatpush.msra.mxu0 %v446
    %635 = vmatpush.msra.mxu0 %v442
    %636 = vmatpush.msra.mxu0 %v438
    %637 = vmatpush.msra.mxu0 %v434
    %638 = vmatpush.msra.mxu0 %v430
    %639 = vmatpush.msra.mxu0 %v426
    %640 = vmatpush.msra.mxu0 %v422
    %641 = vmatpush.msra.mxu0 %v418
    %642 = vmatpush.msra.mxu0 %v414
    %643 = vmatmul.f32.gmra.mxu0 %v220
    %v644 = vpop.f32.mrf.mxu0
    %v645 = vadd.f32 %v625, %v644
    %646 = vdwg.mxu0
    %647 = vmatpush.msra.mxu0 %v283
    %648 = vmatpush.msra.mxu0 %v279
    %649 = vmatpush.msra.mxu0 %v275
    %650 = vmatpush.msra.mxu0 %v271
    %651 = vmatpush.msra.mxu0 %v267
    %652 = vmatpush.msra.mxu0 %v263
    %653 = vmatpush.msra.mxu0 %v259
    %654 = vmatpush.msra.mxu0 %v255
    %655 = vmatpush.msra.mxu0 %v251
    %656 = vmatpush.msra.mxu0 %v247
    %657 = vmatpush.msra.mxu0 %v243
    %658 = vmatpush.msra.mxu0 %v239
    %659 = vmatpush.msra.mxu0 %v235
    %660 = vmatpush.msra.mxu0 %v231
    %661 = vmatpush.msra.mxu0 %v227
    %662 = vmatpush.msra.mxu0 %v223
    %663 = vmatmul.f32.gmra.mxu0 %v217
    %v664 = vpop.f32.mrf.mxu0
    %v665 = vadd.f32 %v481, %v664
    %666 = vdwg.mxu0
    %667 = vmatpush.msra.mxu0 %v347
    %668 = vmatpush.msra.mxu0 %v343
    %669 = vmatpush.msra.mxu0 %v339
    %670 = vmatpush.msra.mxu0 %v335
    %671 = vmatpush.msra.mxu0 %v331
    %672 = vmatpush.msra.mxu0 %v327
    %673 = vmatpush.msra.mxu0 %v323
    %674 = vmatpush.msra.mxu0 %v319
    %675 = vmatpush.msra.mxu0 %v315
    %676 = vmatpush.msra.mxu0 %v311
    %677 = vmatpush.msra.mxu0 %v307
    %678 = vmatpush.msra.mxu0 %v303
    %679 = vmatpush.msra.mxu0 %v299
    %680 = vmatpush.msra.mxu0 %v295
    %681 = vmatpush.msra.mxu0 %v291
    %682 = vmatpush.msra.mxu0 %v287
    %683 = vmatmul.f32.gmra.mxu0 %v218
    %v684 = vpop.f32.mrf.mxu0
    %v685 = vadd.f32 %v665, %v684
    %686 = vdwg.mxu0
    %687 = vmatpush.msra.mxu0 %v411
    %688 = vmatpush.msra.mxu0 %v407
    %689 = vmatpush.msra.mxu0 %v403
    %690 = vmatpush.msra.mxu0 %v399
    %691 = vmatpush.msra.mxu0 %v395
    %692 = vmatpush.msra.mxu0 %v391
    %693 = vmatpush.msra.mxu0 %v387
    %694 = vmatpush.msra.mxu0 %v383
    %695 = vmatpush.msra.mxu0 %v379
    %696 = vmatpush.msra.mxu0 %v375
    %697 = vmatpush.msra.mxu0 %v371
    %698 = vmatpush.msra.mxu0 %v367
    %699 = vmatpush.msra.mxu0 %v363
    %700 = vmatpush.msra.mxu0 %v359
    %701 = vmatpush.msra.mxu0 %v355
    %702 = vmatpush.msra.mxu0 %v351
    %703 = vmatmul.f32.gmra.mxu0 %v219
    %v704 = vpop.f32.mrf.mxu0
    %v705 = vadd.f32 %v685, %v704
    %706 = vdwg.mxu0
    %707 = vmatpush.msra.mxu0 %v475
    %708 = vmatpush.msra.mxu0 %v471
    %709 = vmatpush.msra.mxu0 %v467
    %710 = vmatpush.msra.mxu0 %v463
    %711 = vmatpush.msra.mxu0 %v459
    %712 = vmatpush.msra.mxu0 %v455
    %713 = vmatpush.msra.mxu0 %v451
    %714 = vmatpush.msra.mxu0 %v447
    %715 = vmatpush.msra.mxu0 %v443
    %716 = vmatpush.msra.mxu0 %v439
    %717 = vmatpush.msra.mxu0 %v435
    %718 = vmatpush.msra.mxu0 %v431
    %719 = vmatpush.msra.mxu0 %v427
    %720 = vmatpush.msra.mxu0 %v423
    %721 = vmatpush.msra.mxu0 %v419
    %722 = vmatpush.msra.mxu0 %v415
    %723 = vmatmul.f32.gmra.mxu0 %v220
    %v724 = vpop.f32.mrf.mxu0
    %v725 = vadd.f32 %v705, %v724
    %726 = vdwg.mxu0
    %727 = vmatpush.msra.mxu0 %v284
    %728 = vmatpush.msra.mxu0 %v280
    %729 = vmatpush.msra.mxu0 %v276
    %730 = vmatpush.msra.mxu0 %v272
    %731 = vmatpush.msra.mxu0 %v268
    %732 = vmatpush.msra.mxu0 %v264
    %733 = vmatpush.msra.mxu0 %v260
    %734 = vmatpush.msra.mxu0 %v256
    %735 = vmatpush.msra.mxu0 %v252
    %736 = vmatpush.msra.mxu0 %v248
    %737 = vmatpush.msra.mxu0 %v244
    %738 = vmatpush.msra.mxu0 %v240
    %739 = vmatpush.msra.mxu0 %v236
    %740 = vmatpush.msra.mxu0 %v232
    %741 = vmatpush.msra.mxu0 %v228
    %742 = vmatpush.msra.mxu0 %v224
    %743 = vmatmul.f32.gmra.mxu0 %v217
    %v744 = vpop.f32.mrf.mxu0
    %v745 = vadd.f32 %v482, %v744
    %746 = vdwg.mxu0
    %747 = vmatpush.msra.mxu0 %v348
    %748 = vmatpush.msra.mxu0 %v344
    %749 = vmatpush.msra.mxu0 %v340
    %750 = vmatpush.msra.mxu0 %v336
    %751 = vmatpush.msra.mxu0 %v332
    %752 = vmatpush.msra.mxu0 %v328
    %753 = vmatpush.msra.mxu0 %v324
    %754 = vmatpush.msra.mxu0 %v320
    %755 = vmatpush.msra.mxu0 %v316
    %756 = vmatpush.msra.mxu0 %v312
    %757 = vmatpush.msra.mxu0 %v308
    %758 = vmatpush.msra.mxu0 %v304
    %759 = vmatpush.msra.mxu0 %v300
    %760 = vmatpush.msra.mxu0 %v296
    %761 = vmatpush.msra.mxu0 %v292
    %762 = vmatpush.msra.mxu0 %v288
    %763 = vmatmul.f32.gmra.mxu0 %v218
    %v764 = vpop.f32.mrf.mxu0
    %v765 = vadd.f32 %v745, %v764
    %766 = vdwg.mxu0
    %767 = vmatpush.msra.mxu0 %v412
    %768 = vmatpush.msra.mxu0 %v408
    %769 = vmatpush.msra.mxu0 %v404
    %770 = vmatpush.msra.mxu0 %v400
    %771 = vmatpush.msra.mxu0 %v396
    %772 = vmatpush.msra.mxu0 %v392
    %773 = vmatpush.msra.mxu0 %v388
    %774 = vmatpush.msra.mxu0 %v384
    %775 = vmatpush.msra.mxu0 %v380
    %776 = vmatpush.msra.mxu0 %v376
    %777 = vmatpush.msra.mxu0 %v372
    %778 = vmatpush.msra.mxu0 %v368
    %779 = vmatpush.msra.mxu0 %v364
    %780 = vmatpush.msra.mxu0 %v360
    %781 = vmatpush.msra.mxu0 %v356
    %782 = vmatpush.msra.mxu0 %v352
    %783 = vmatmul.f32.gmra.mxu0 %v219
    %v784 = vpop.f32.mrf.mxu0
    %v785 = vadd.f32 %v765, %v784
    %786 = vdwg.mxu0
    %787 = vmatpush.msra.mxu0 %v476
    %788 = vmatpush.msra.mxu0 %v472
    %789 = vmatpush.msra.mxu0 %v468
    %790 = vmatpush.msra.mxu0 %v464
    %791 = vmatpush.msra.mxu0 %v460
    %792 = vmatpush.msra.mxu0 %v456
    %793 = vmatpush.msra.mxu0 %v452
    %794 = vmatpush.msra.mxu0 %v448
    %795 = vmatpush.msra.mxu0 %v444
    %796 = vmatpush.msra.mxu0 %v440
    %797 = vmatpush.msra.mxu0 %v436
    %798 = vmatpush.msra.mxu0 %v432
    %799 = vmatpush.msra.mxu0 %v428
    %800 = vmatpush.msra.mxu0 %v424
    %801 = vmatpush.msra.mxu0 %v420
    %802 = vmatpush.msra.mxu0 %v416
    %803 = vmatmul.f32.gmra.mxu0 %v220
    %v804 = vpop.f32.mrf.mxu0
    %v805 = vadd.f32 %v785, %v804
    %806 = vdwg.mxu0
    %v807 = vmax.f32 %v565, 0.0
    %v808 = vmax.f32 %v645, 0.0
    %v809 = vmax.f32 %v725, 0.0
    %v810 = vmax.f32 %v805, 0.0
    %v811 = vld [vmem:[#allocation10] sm:$0xff]
    %v812 = vld [vmem:[#allocation10 + $0x8] sm:$0xff]
    %v813 = vld [vmem:[#allocation10 + $0x10] sm:$0xff]
    %v814 = vld [vmem:[#allocation10 + $0x18] sm:$0xff]
    %v815 = vld [vmem:[#allocation10 + $0x20] sm:$0xff]
    %v816 = vld [vmem:[#allocation10 + $0x28] sm:$0xff]
    %v817 = vld [vmem:[#allocation10 + $0x30] sm:$0xff]
    %v818 = vld [vmem:[#allocation10 + $0x38] sm:$0xff]
    %v819 = vld [vmem:[#allocation10 + $0x40] sm:$0xff]
    %v820 = vld [vmem:[#allocation10 + $0x48] sm:$0xff]
    %v821 = vld [vmem:[#allocation10 + $0x50] sm:$0xff]
    %v822 = vld [vmem:[#allocation10 + $0x58] sm:$0xff]
    %v823 = vld [vmem:[#allocation10 + $0x60] sm:$0xff]
    %v824 = vld [vmem:[#allocation10 + $0x68] sm:$0xff]
    %v825 = vld [vmem:[#allocation10 + $0x70] sm:$0xff]
    %v826 = vld [vmem:[#allocation10 + $0x78] sm:$0xff]
    %v827 = vld [vmem:[#allocation10 + $0x80] sm:$0xff]
    %v828 = vld [vmem:[#allocation10 + $0x88] sm:$0xff]
    %v829 = vld [vmem:[#allocation10 + $0x90] sm:$0xff]
    %v830 = vld [vmem:[#allocation10 + $0x98] sm:$0xff]
    %v831 = vld [vmem:[#allocation10 + $0xa0] sm:$0xff]
    %v832 = vld [vmem:[#allocation10 + $0xa8] sm:$0xff]
    %v833 = vld [vmem:[#allocation10 + $0xb0] sm:$0xff]
    %v834 = vld [vmem:[#allocation10 + $0xb8] sm:$0xff]
    %v835 = vld [vmem:[#allocation10 + $0xc0] sm:$0xff]
    %v836 = vld [vmem:[#allocation10 + $0xc8] sm:$0xff]
    %v837 = vld [vmem:[#allocation10 + $0xd0] sm:$0xff]
    %v838 = vld [vmem:[#allocation10 + $0xd8] sm:$0xff]
    %v839 = vld [vmem:[#allocation10 + $0xe0] sm:$0xff]
    %v840 = vld [vmem:[#allocation10 + $0xe8] sm:$0xff]
    %v841 = vld [vmem:[#allocation10 + $0xf0] sm:$0xff]
    %v842 = vld [vmem:[#allocation10 + $0xf8] sm:$0xff]
    %v843 = vld [vmem:[#allocation10 + $0x100] sm:$0xff]
    %v844 = vld [vmem:[#allocation10 + $0x108] sm:$0xff]
    %v845 = vld [vmem:[#allocation10 + $0x110] sm:$0xff]
    %v846 = vld [vmem:[#allocation10 + $0x118] sm:$0xff]
    %v847 = vld [vmem:[#allocation10 + $0x120] sm:$0xff]
    %v848 = vld [vmem:[#allocation10 + $0x128] sm:$0xff]
    %v849 = vld [vmem:[#allocation10 + $0x130] sm:$0xff]
    %v850 = vld [vmem:[#allocation10 + $0x138] sm:$0xff]
    %v851 = vld [vmem:[#allocation10 + $0x140] sm:$0xff]
    %v852 = vld [vmem:[#allocation10 + $0x148] sm:$0xff]
    %v853 = vld [vmem:[#allocation10 + $0x150] sm:$0xff]
    %v854 = vld [vmem:[#allocation10 + $0x158] sm:$0xff]
    %v855 = vld [vmem:[#allocation10 + $0x160] sm:$0xff]
    %v856 = vld [vmem:[#allocation10 + $0x168] sm:$0xff]
    %v857 = vld [vmem:[#allocation10 + $0x170] sm:$0xff]
    %v858 = vld [vmem:[#allocation10 + $0x178] sm:$0xff]
    %v859 = vld [vmem:[#allocation10 + $0x180] sm:$0xff]
    %v860 = vld [vmem:[#allocation10 + $0x188] sm:$0xff]
    %v861 = vld [vmem:[#allocation10 + $0x190] sm:$0xff]
    %v862 = vld [vmem:[#allocation10 + $0x198] sm:$0xff]
    %v863 = vld [vmem:[#allocation10 + $0x1a0] sm:$0xff]
    %v864 = vld [vmem:[#allocation10 + $0x1a8] sm:$0xff]
    %v865 = vld [vmem:[#allocation10 + $0x1b0] sm:$0xff]
    %v866 = vld [vmem:[#allocation10 + $0x1b8] sm:$0xff]
    %v867 = vld [vmem:[#allocation10 + $0x1c0] sm:$0xff]
    %v868 = vld [vmem:[#allocation10 + $0x1c8] sm:$0xff]
    %v869 = vld [vmem:[#allocation10 + $0x1d0] sm:$0xff]
    %v870 = vld [vmem:[#allocation10 + $0x1d8] sm:$0xff]
    %v871 = vld [vmem:[#allocation10 + $0x1e0] sm:$0xff]
    %v872 = vld [vmem:[#allocation10 + $0x1e8] sm:$0xff]
    %v873 = vld [vmem:[#allocation10 + $0x1f0] sm:$0xff]
    %v874 = vld [vmem:[#allocation10 + $0x1f8] sm:$0xff]
    %v875 = vld [vmem:[%s6] sm:$0x1]
    %v877 = vperm.slane %v875, 0
    %879 = vmatpush.msra.mxu0 %v826
    %880 = vmatpush.msra.mxu0 %v825
    %881 = vmatpush.msra.mxu0 %v824
    %882 = vmatpush.msra.mxu0 %v823
    %883 = vmatpush.msra.mxu0 %v822
    %884 = vmatpush.msra.mxu0 %v821
    %885 = vmatpush.msra.mxu0 %v820
    %886 = vmatpush.msra.mxu0 %v819
    %887 = vmatpush.msra.mxu0 %v818
    %888 = vmatpush.msra.mxu0 %v817
    %889 = vmatpush.msra.mxu0 %v816
    %890 = vmatpush.msra.mxu0 %v815
    %891 = vmatpush.msra.mxu0 %v814
    %892 = vmatpush.msra.mxu0 %v813
    %893 = vmatpush.msra.mxu0 %v812
    %894 = vmatpush.msra.mxu0 %v811
    %895 = vmatmul.f32.gmra.mxu0 %v807
    %v896 = vpop.f32.mrf.mxu0
    %v897 = vadd.f32 %v877, %v896
    %898 = vdwg.mxu0
    %899 = vmatpush.msra.mxu0 %v842
    %900 = vmatpush.msra.mxu0 %v841
    %901 = vmatpush.msra.mxu0 %v840
    %902 = vmatpush.msra.mxu0 %v839
    %903 = vmatpush.msra.mxu0 %v838
    %904 = vmatpush.msra.mxu0 %v837
    %905 = vmatpush.msra.mxu0 %v836
    %906 = vmatpush.msra.mxu0 %v835
    %907 = vmatpush.msra.mxu0 %v834
    %908 = vmatpush.msra.mxu0 %v833
    %909 = vmatpush.msra.mxu0 %v832
    %910 = vmatpush.msra.mxu0 %v831
    %911 = vmatpush.msra.mxu0 %v830
    %912 = vmatpush.msra.mxu0 %v829
    %913 = vmatpush.msra.mxu0 %v828
    %914 = vmatpush.msra.mxu0 %v827
    %915 = vmatmul.f32.gmra.mxu0 %v808
    %v916 = vpop.f32.mrf.mxu0
    %v917 = vadd.f32 %v897, %v916
    %918 = vdwg.mxu0
    %919 = vmatpush.msra.mxu0 %v858
    %920 = vmatpush.msra.mxu0 %v857
    %921 = vmatpush.msra.mxu0 %v856
    %922 = vmatpush.msra.mxu0 %v855
    %923 = vmatpush.msra.mxu0 %v854
    %924 = vmatpush.msra.mxu0 %v853
    %925 = vmatpush.msra.mxu0 %v852
    %926 = vmatpush.msra.mxu0 %v851
    %927 = vmatpush.msra.mxu0 %v850
    %928 = vmatpush.msra.mxu0 %v849
    %929 = vmatpush.msra.mxu0 %v848
    %930 = vmatpush.msra.mxu0 %v847
    %931 = vmatpush.msra.mxu0 %v846
    %932 = vmatpush.msra.mxu0 %v845
    %933 = vmatpush.msra.mxu0 %v844
    %934 = vmatpush.msra.mxu0 %v843
    %935 = vmatmul.f32.gmra.mxu0 %v809
    %v936 = vpop.f32.mrf.mxu0
    %v937 = vadd.f32 %v917, %v936
    %938 = vdwg.mxu0
    %939 = vmatpush.msra.mxu0 %v874
    %940 = vmatpush.msra.mxu0 %v873
    %941 = vmatpush.msra.mxu0 %v872
    %942 = vmatpush.msra.mxu0 %v871
    %943 = vmatpush.msra.mxu0 %v870
    %944 = vmatpush.msra.mxu0 %v869
    %945 = vmatpush.msra.mxu0 %v868
    %946 = vmatpush.msra.mxu0 %v867
    %947 = vmatpush.msra.mxu0 %v866
    %948 = vmatpush.msra.mxu0 %v865
    %949 = vmatpush.msra.mxu0 %v864
    %950 = vmatpush.msra.mxu0 %v863
    %951 = vmatpush.msra.mxu0 %v862
    %952 = vmatpush.msra.mxu0 %v861
    %953 = vmatpush.msra.mxu0 %v860
    %954 = vmatpush.msra.mxu0 %v859
    %955 = vmatmul.f32.gmra.mxu0 %v810
    %v956 = vpop.f32.mrf.mxu0
    %v957 = vadd.f32 %v937, %v956
    %958 = vdwg.mxu0
    %959 = vst [vmem:[%s7] sm:$0xff] %v957
    // Predicated region
    $region54: #{ffc_regression_parkinsons.1} parent=1 // pred_check
      _
    $region55: #{ffc_regression_parkinsons.1} parent=1 // pred_check_branch
      %961 = sbr.rel (0) target = $region57
    $region56: #{ffc_regression_parkinsons.1} parent=1 // pred_region
      _
    $region57: #{ffc_regression_parkinsons.1} parent=1 // pred_fallthru
      _
    // Predicated region
    $region58: #{ffc_regression_parkinsons.1} parent=1 // pred_check
      _
    $region59: #{ffc_regression_parkinsons.1} parent=1 // pred_check_branch
      %963 = sbr.rel (0) target = $region61
    $region60: #{ffc_regression_parkinsons.1} parent=1 // pred_region
      _
    $region61: #{ffc_regression_parkinsons.1} parent=1 // pred_fallthru
      _
    %964 = vsyncpa [#allocation3], 1
    %965 = vsyncpa [#allocation5], 1
    %966 = vsyncpa [#allocation8], 1
    %967 = vsyncpa [#allocation11], 1

</llo_original>
